<compile_context>
chip_gen: v7x
topology: tpu7x:2x2x1
jax: 0.10.0
libtpu: 0.0.40
codegen_flags: <defaults>
</compile_context>

<pallas_src>
import functools

import jax
import jax.numpy as jnp
from jax.experimental import pallas as pl
from jax.experimental.pallas import tpu as pltpu


# ----------------------------------------------------------------------------
# Fused linear kernel: y = act(x @ W + b)
# ----------------------------------------------------------------------------
def _linear_kernel(x_ref, w_ref, b_ref, o_ref, acc_ref, *, activation):
    k = pl.program_id(1)

    @pl.when(k == 0)
    def _():
        acc_ref[...] = jnp.zeros_like(acc_ref)

    acc_ref[...] += jnp.dot(
        x_ref[...], w_ref[...], preferred_element_type=jnp.float32
    )

    @pl.when(k == pl.num_programs(1) - 1)
    def _():
        y = acc_ref[...] + b_ref[...].astype(jnp.float32)
        if activation == "relu":
            y = jnp.maximum(y, 0.0)
        o_ref[...] = y.astype(o_ref.dtype)


def _pick_tile(dim, candidates):
    for c in candidates:
        if dim % c == 0:
            return c
    return dim  # fall back to full extent (valid block: equals array dim)


def pallas_linear(x, w, b, activation=None):
    """y = act(x @ w + b) with a tiled, pipelined Pallas matmul."""
    M, K = x.shape
    K2, N = w.shape
    assert K == K2 and b.shape == (N,), (x.shape, w.shape, b.shape)

    tn = _pick_tile(N, (256, 128))
    tk = _pick_tile(K, (512, 256, 128))
    grid = (N // tn, K // tk)
    b2 = b.reshape(1, N)

    kernel = functools.partial(_linear_kernel, activation=activation)
    return pl.pallas_call(
        kernel,
        out_shape=jax.ShapeDtypeStruct((M, N), x.dtype),
        grid_spec=pltpu.PrefetchScalarGridSpec(
            num_scalar_prefetch=0,
            grid=grid,
            in_specs=[
                pl.BlockSpec((M, tk), lambda j, k: (0, k)),   # activations
                pl.BlockSpec((tk, tn), lambda j, k: (k, j)),  # weights
                pl.BlockSpec((1, tn), lambda j, k: (0, j)),   # bias
            ],
            out_specs=pl.BlockSpec((M, tn), lambda j, k: (0, j)),
            scratch_shapes=[pltpu.VMEM((M, tn), jnp.float32)],
        ),
        compiler_params=pltpu.CompilerParams(
            dimension_semantics=("parallel", "arbitrary"),
        ),
    )(x, w, b2)


# ----------------------------------------------------------------------------
# Concrete sub-modules (backbone / metric embedder / classifier)
# ----------------------------------------------------------------------------
class PallasLinear:
    def __init__(self, key, in_features, out_features, activation=None,
                 dtype=jnp.float32):
        kw, kb = jax.random.split(key)
        scale = 1.0 / (in_features ** 0.5)
        self.w = (jax.random.normal(kw, (in_features, out_features),
                                    dtype=jnp.float32) * scale).astype(dtype)
        self.b = (jax.random.normal(kb, (out_features,),
                                    dtype=jnp.float32) * 0.01).astype(dtype)
        self.activation = activation

    def __call__(self, x):
        return pallas_linear(x, self.w, self.b, activation=self.activation)


class Backbone:
    """Flattens NCHW to a lane-dense (N, C*H*W) view, then fused linear+ReLU."""

    def __init__(self, key, in_features, out_features):
        self.fc = PallasLinear(key, in_features, out_features, activation="relu")

    def __call__(self, x):
        n = x.shape[0]
        x2d = x.reshape(n, -1)  # last dim = C*H*W, multiple of 128 -> lane-dense
        return self.fc(x2d)


class MetricEmbedder:
    def __init__(self, key, in_features, embed_dim):
        self.fc = PallasLinear(key, in_features, embed_dim, activation=None)

    def __call__(self, x):
        return self.fc(x)


class Classifier:
    def __init__(self, key, embed_dim, num_classes):
        self.fc = PallasLinear(key, embed_dim, num_classes, activation=None)

    def __call__(self, x):
        return self.fc(x)


# ----------------------------------------------------------------------------
# MetricLearningNetwork — mirrors the PyTorch forward control flow
# ----------------------------------------------------------------------------
class MetricLearningNetwork:
    def __init__(self, backbone, metric_embedder, classifiers):
        self.backbone = backbone
        self.metric_embedder = metric_embedder
        self.classifiers = list(classifiers)

    # TODO(synk): load_*/save_* checkpoint helpers (torch.load/torch.save) are
    # host-side I/O with no Pallas equivalent; intentionally omitted.

    def __call__(self, x, classifier_idx=0, target="classifications"):
        return self.forward(x, classifier_idx, target)

    def forward(self, x, classifier_idx=0, target="classifications"):
        backbone_output = None
        embedding_output = None
        classifier_output = None
        is_dict = isinstance(x, dict)
        for _ in range(1):
            if not (is_dict and "embedding" in x):
                if not (is_dict and "backbone" in x):
                    backbone_output = self.backbone(x["input"] if is_dict else x)
                else:
                    backbone_output = x["backbone"]
                if target == "backbone":
                    break
                embedding_output = self.metric_embedder(backbone_output)
            else:
                embedding_output = x["embedding"]
            if target == "embedding":
                break
            classifier_output = self.classifiers[classifier_idx](embedding_output)
        return {
            "backbone": backbone_output,
            "embedding": embedding_output,
            "classifications": classifier_output,
        }


# ----------------------------------------------------------------------------
if __name__ == "__main__":
    key = jax.random.PRNGKey(0)
    kx, kb, ke, kc = jax.random.split(key, 4)

    # Small shapes consistent with a conv-style reid feed.
    N_, C, H, W = 2, 4, 16, 16
    in_features = C * H * W      # 1024 (lane-dense, multiple of 128)
    backbone_dim = 256
    embed_dim = 128
    num_classes = 128

    x = jax.random.normal(kx, (N_, C, H, W), dtype=jnp.float32)

    backbone = Backbone(kb, in_features, backbone_dim)
    embedder = MetricEmbedder(ke, backbone_dim, embed_dim)
    classifier = Classifier(kc, embed_dim, num_classes)
    model = MetricLearningNetwork(backbone, embedder, [classifier])

    out = model(x)
    out = {k: jax.block_until_ready(v) for k, v in out.items()}

    # Pure-JAX reference for correctness.
    def ref_linear(xx, w, b, act):
        y = jnp.dot(xx, w, preferred_element_type=jnp.float32) + b
        if act == "relu":
            y = jnp.maximum(y, 0.0)
        return y.astype(xx.dtype)

    x2d = x.reshape(N_, -1)
    ref_backbone = ref_linear(x2d, backbone.fc.w, backbone.fc.b, "relu")
    ref_embed = ref_linear(ref_backbone, embedder.fc.w, embedder.fc.b, None)
    ref_cls = ref_linear(ref_embed, classifier.fc.w, classifier.fc.b, None)

    assert out["backbone"].shape == (N_, backbone_dim)
    assert out["embedding"].shape == (N_, embed_dim)
    assert out["classifications"].shape == (N_, num_classes)
    assert bool(jnp.allclose(out["backbone"], ref_backbone, rtol=2e-2, atol=2e-2))
    assert bool(jnp.allclose(out["embedding"], ref_embed, rtol=2e-2, atol=2e-2))
    assert bool(jnp.allclose(out["classifications"], ref_cls, rtol=2e-2, atol=2e-2))

    # Exercise the dict short-circuit paths of the PyTorch forward as well.
    out_from_embedding = model({"embedding": out["embedding"]})
    jax.block_until_ready(out_from_embedding["classifications"])
    assert bool(jnp.allclose(out_from_embedding["classifications"], ref_cls,
                             rtol=2e-2, atol=2e-2))

    out_backbone_only = model(x, target="backbone")
    jax.block_until_ready(out_backbone_only["backbone"])
    assert out_backbone_only["classifications"] is None

    print("KERNEL_OK")
</pallas_src>

<mosaic_0001>
module attributes {stable_mosaic.version = 11 : i64} {
  func.func @_linear_kernel(%arg0: i32, %arg1: i32, %arg2: memref<2x512xf32, #tpu.memory_space<vmem>>, %arg3: memref<512x256xf32, #tpu.memory_space<vmem>>, %arg4: memref<1x256xf32, #tpu.memory_space<vmem>>, %arg5: memref<2x256xf32, #tpu.memory_space<vmem>>, %arg6: memref<2x256xf32, #tpu.memory_space<vmem>>) attributes {dimension_semantics = [#tpu.dimension_semantics<parallel>, #tpu.dimension_semantics<arbitrary>], iteration_bounds = array<i64: 1, 2>, scalar_prefetch = 0 : i64, scratch_operands = 1 : i64, tpu.core_type = #tpu.core_type<tc>, window_params = [{transform_indices = @transform_0, window_bounds = array<i64: 2, 512>}, {transform_indices = @transform_1, window_bounds = array<i64: 512, 256>}, {transform_indices = @transform_2, window_bounds = array<i64: 1, 256>}, {transform_indices = @transform_3, window_bounds = array<i64: 2, 256>}]} {
    %c0_i32 = arith.constant 0 : i32
    %0 = arith.cmpi eq, %arg1, %c0_i32 : i32
    %1 = arith.extui %0 : i1 to i32
    %c0_i32_0 = arith.constant 0 : i32
    %2 = arith.cmpi ne, %1, %c0_i32_0 : i32
    scf.if %2 {
      %cst_9 = arith.constant 0.000000e+00 : f32
      %12 = vector.broadcast %cst_9 : f32 to vector<2x256xf32>
      %c0_10 = arith.constant 0 : index
      %c0_11 = arith.constant 0 : index
      %13 = vector.load %arg6[%c0_10, %c0_11] : memref<2x256xf32, #tpu.memory_space<vmem>>, vector<2x256xf32>
      tpu.vector_store %arg6[%c0_10, %c0_11], %12 {strides = array<i32>} : memref<2x256xf32, #tpu.memory_space<vmem>>, vector<2x256xf32>,
    } else {
    }
    %c0 = arith.constant 0 : index
    %c0_1 = arith.constant 0 : index
    %3 = vector.load %arg6[%c0, %c0_1] : memref<2x256xf32, #tpu.memory_space<vmem>>, vector<2x256xf32>
    %c0_2 = arith.constant 0 : index
    %c0_3 = arith.constant 0 : index
    %4 = vector.load %arg2[%c0_2, %c0_3] : memref<2x512xf32, #tpu.memory_space<vmem>>, vector<2x512xf32>
    %c0_4 = arith.constant 0 : index
    %c0_5 = arith.constant 0 : index
    %5 = vector.load %arg3[%c0_4, %c0_5] : memref<512x256xf32, #tpu.memory_space<vmem>>, vector<512x256xf32>
    %cst = arith.constant dense<0.000000e+00> : vector<2x256xf32>
    %6 = tpu.matmul %4, %5, %cst {dimension_numbers = #tpu.dot_dimension_numbers<[1], [0], [0], [1], [0, 0, 1, 1], [], []>} : vector<2x512xf32>, vector<512x256xf32>, vector<2x256xf32> -> vector<2x256xf32>
    %7 = arith.addf %3, %6 : vector<2x256xf32>
    %c0_6 = arith.constant 0 : index
    %c0_7 = arith.constant 0 : index
    %8 = vector.load %arg6[%c0_6, %c0_7] : memref<2x256xf32, #tpu.memory_space<vmem>>, vector<2x256xf32>
    tpu.vector_store %arg6[%c0_6, %c0_7], %7 {strides = array<i32>} : memref<2x256xf32, #tpu.memory_space<vmem>>, vector<2x256xf32>,
    %c1_i32 = arith.constant 1 : i32
    %9 = arith.cmpi eq, %arg1, %c1_i32 : i32
    %10 = arith.extui %9 : i1 to i32
    %c0_i32_8 = arith.constant 0 : i32
    %11 = arith.cmpi ne, %10, %c0_i32_8 : i32
    scf.if %11 {
      %c0_9 = arith.constant 0 : index
      %c0_10 = arith.constant 0 : index
      %12 = vector.load %arg6[%c0_9, %c0_10] : memref<2x256xf32, #tpu.memory_space<vmem>>, vector<2x256xf32>
      %c0_11 = arith.constant 0 : index
      %c0_12 = arith.constant 0 : index
      %13 = vector.load %arg4[%c0_11, %c0_12] : memref<1x256xf32, #tpu.memory_space<vmem>>, vector<1x256xf32>
      %14 = vector.broadcast %13 : vector<1x256xf32> to vector<2x256xf32>
      %15 = arith.addf %12, %14 : vector<2x256xf32>
      %cst_13 = arith.constant 0.000000e+00 : f32
      %16 = vector.broadcast %cst_13 : f32 to vector<2x256xf32>
      %17 = arith.maximumf %15, %16 : vector<2x256xf32>
      %c0_14 = arith.constant 0 : index
      %c0_15 = arith.constant 0 : index
      %18 = vector.load %arg5[%c0_14, %c0_15] : memref<2x256xf32, #tpu.memory_space<vmem>>, vector<2x256xf32>
      tpu.vector_store %arg5[%c0_14, %c0_15], %17 {strides = array<i32>} : memref<2x256xf32, #tpu.memory_space<vmem>>, vector<2x256xf32>,
    } else {
    }
    return
  }
  func.func @transform_0(%arg0: i32, %arg1: i32) -> (i32, i32) {
    %c0_i32 = arith.constant 0 : i32
    %c0_i32_0 = arith.constant 0 : i32
    return %c0_i32, %arg1 : i32, i32
  }
  func.func @transform_1(%arg0: i32, %arg1: i32) -> (i32, i32) {
    %c0_i32 = arith.constant 0 : i32
    return %arg1, %arg0 : i32, i32
  }
  func.func @transform_2(%arg0: i32, %arg1: i32) -> (i32, i32) {
    %c0_i32 = arith.constant 0 : i32
    %c0_i32_0 = arith.constant 0 : i32
    return %c0_i32, %arg0 : i32, i32
  }
  func.func @transform_3(%arg0: i32, %arg1: i32) -> (i32, i32) {
    %c0_i32 = arith.constant 0 : i32
    %c0_i32_0 = arith.constant 0 : i32
    return %c0_i32, %arg0 : i32, i32
  }
}

</mosaic_0001>

<llo_original>
// kernel: tpu_custom_call.1
$region0: #{tpu_custom_call.1}
  #allocation0 [shape = 'u32[]', space=smem, size = 0x4, offset = 0x4, fixed_abs, tag = 'smem constant byte address 0x4 - core index']
  #allocation1 [shape = 'u32[144,128]{1,0:T(1,128)}', space=vmem, size = 0x12000, scoped, tag = 'internal scratch']
  #allocation2 [shape = 'f32[2,256]{1,0:T(2,128)}', space=vmem, size = 0x800, scoped, tag = 'scratch operand']
  %s0 = inlined_call_operand.hbm [shape: f32[2,1024], index: 0, kind: input, shape index: {}]
  %s1 = inlined_call_operand.hbm [shape: f32[1024,256], index: 1, kind: input, shape index: {}]
  %s2 = inlined_call_operand.vmem [shape: f32[1,256], index: 2, kind: input, shape index: {}]
  %s3 = inlined_call_operand.hbm [shape: f32[2,256], index: 3, kind: output, shape index: {}]
  %s4 = sld [smem:[#allocation0]]
  $region61: #{tpu_custom_call.1} parent=0
    _
  %s6 = ssub.s32 1, %s4
  %s7 = scalar_select 0, %s6, %s4
  $region1: #{tpu_custom_call.1} parent=0
    #allocation3 [shape = 'u8[8192]{0}', space=vmem, size = 0x2000, scoped, tag = 'input window, operand 0']
    #allocation4 [shape = 's32[2]{0}', space=sflag, size = 0x8, scoped, tag = 'scoped memory for tpu_custom_call.1']
    #allocation5 [shape = 's32[2]{0}', space=sflag, size = 0x8, scoped, tag = 'scoped memory for tpu_custom_call.1']
    #allocation6 [shape = 'u8[1048576]{0}', space=vmem, size = 0x100000, scoped, tag = 'input window, operand 1']
    #allocation7 [shape = 's32[2]{0}', space=sflag, size = 0x8, scoped, tag = 'scoped memory for tpu_custom_call.1']
    #allocation8 [shape = 'u8[2048]{0}', space=vmem, size = 0x800, scoped, tag = 'output window, operand 0, single buffered']
    %8 = vsyncpa [#allocation4], 0
    %s9 = scalar_lea.sflag [#allocation4], 1
    %10 = vsyncpa %s9, 0
    %11 = vsyncpa [#allocation7], 0
    %s12 = scalar_lea.sflag [#allocation7], 1
    %13 = vsyncpa %s12, 0
    %14 = vsyncpa [#allocation5], 0
    loop: start=0, step=1, limit=4
    $region2: #{tpu_custom_call.1} parent=1 // loop_pre_header
      _
    $region3: #{tpu_custom_call.1} parent=1 // loop_header
      %s16 = sphi 0, %s20
      %p17 = scmp.ge.s32.totalorder %s16, 4
      %s23 = sphi 0, %s35
      %s24 = sphi 0, %s31
      %s25 = sphi 0, %s23
      %s26 = sphi 0, %s24
      %s27 = sphi 0, %s25
      %s28 = sphi 0, %s26
      %s38 = sphi 0, %s40
      %s41 = sphi 0, %s38
      %s42 = sphi 0, %s41
      %s58 = sphi 0, %s42
      %s66 = sphi 0, %s68
      %s69 = sphi 0, %s66
      %s70 = sphi 0, %s69
      %s86 = sphi 0, %s70
      %s92 = sphi 0, %s94
      %s95 = sphi 0, %s92
      %s96 = sphi 0, %s95
      %s112 = sphi 0, %s96
      %s118 = sphi 0, %s120
      %s121 = sphi 0, %s118
      %s122 = sphi 0, %s121
      %s138 = sphi 0, %s122
    $region4: #{tpu_custom_call.1} parent=1 // loop_header_branch
      %19 = sbr.rel (%p17) target = $region8
    $region5: #{tpu_custom_call.1} parent=1 // loop_body
      %s21 = ssub.s32 %s16, 1
      %s22 = ssub.s32 %s16, 2
      %s29 = sadd.s32 1, %s24
      %p30 = scmp.ge.s32.totalorder %s29, 2
      %s31 = scalar_select %p30, 0, %s29
      %s32 = sadd.s32 1, %s23
      %s33 = scalar_select %p30, %s32, %s23
      %p34 = scmp.ge.s32.totalorder %s33, 1
      %s35 = scalar_select %p34, 0, %s33
      %s36 = ssub.s32 %s24, %s31
      %p37 = scmp.eq.s32.totalorder %s36, 0
      %s39 = sadd.s32 %s38, 1
      %s40 = scalar_select %p37, %s38, %s39
      %p43 = pneg %p37
      %p44 = scmp.eq.s32.totalorder %s16, 1
      %p45 = por %p43, %p44
      %p46 = scmp.ne.s32.totalorder %s38, %s41
      %p47 = scmp.eq.s32.totalorder %s16, 0
      %p48 = por %p46, %p47
      %p49 = scmp.ne.s32.totalorder %s38, %s41
      %p50 = scmp.eq.s32.totalorder %s21, 1
      %p51 = por %p49, %p50
      %p52 = scmp.ne.s32.totalorder %s41, %s42
      %p53 = scmp.eq.s32.totalorder %s21, 0
      %p54 = por %p52, %p53
      %p55 = scmp.ne.s32.totalorder %s41, %s42
      %p56 = scmp.eq.s32.totalorder %s22, 1
      %p57 = por %p55, %p56
      %p59 = scmp.ne.s32.totalorder %s42, %s58
      %p60 = scmp.eq.s32.totalorder %s22, 0
      %p61 = por %p59, %p60
      %s62 = ssub.s32 %s24, %s31
      %s63 = ssub.s32 %s23, %s35
      %s64 = sor.u32 %s62, %s63
      %p65 = scmp.eq.s32.totalorder %s64, 0
      %s67 = sadd.s32 %s66, 1
      %s68 = scalar_select %p65, %s66, %s67
      %p71 = pneg %p65
      %p72 = scmp.eq.s32.totalorder %s16, 1
      %p73 = por %p71, %p72
      %p74 = scmp.ne.s32.totalorder %s66, %s69
      %p75 = scmp.eq.s32.totalorder %s16, 0
      %p76 = por %p74, %p75
      %p77 = scmp.ne.s32.totalorder %s66, %s69
      %p78 = scmp.eq.s32.totalorder %s21, 1
      %p79 = por %p77, %p78
      %p80 = scmp.ne.s32.totalorder %s69, %s70
      %p81 = scmp.eq.s32.totalorder %s21, 0
      %p82 = por %p80, %p81
      %p83 = scmp.ne.s32.totalorder %s69, %s70
      %p84 = scmp.eq.s32.totalorder %s22, 1
      %p85 = por %p83, %p84
      %p87 = scmp.ne.s32.totalorder %s70, %s86
      %p88 = scmp.eq.s32.totalorder %s22, 0
      %p89 = por %p87, %p88
      %s90 = ssub.s32 %s23, %s35
      %p91 = scmp.eq.s32.totalorder %s90, 0
      %s93 = sadd.s32 %s92, 1
      %s94 = scalar_select %p91, %s92, %s93
      %p97 = pneg %p91
      %p98 = scmp.eq.s32.totalorder %s16, 1
      %p99 = por %p97, %p98
      %p100 = scmp.ne.s32.totalorder %s92, %s95
      %p101 = scmp.eq.s32.totalorder %s16, 0
      %p102 = por %p100, %p101
      %p103 = scmp.ne.s32.totalorder %s92, %s95
      %p104 = scmp.eq.s32.totalorder %s21, 1
      %p105 = por %p103, %p104
      %p106 = scmp.ne.s32.totalorder %s95, %s96
      %p107 = scmp.eq.s32.totalorder %s21, 0
      %p108 = por %p106, %p107
      %p109 = scmp.ne.s32.totalorder %s95, %s96
      %p110 = scmp.eq.s32.totalorder %s22, 1
      %p111 = por %p109, %p110
      %p113 = scmp.ne.s32.totalorder %s96, %s112
      %p114 = scmp.eq.s32.totalorder %s22, 0
      %p115 = por %p113, %p114
      %s116 = ssub.s32 %s23, %s35
      %p117 = scmp.eq.s32.totalorder %s116, 0
      %s119 = sadd.s32 %s118, 1
      %s120 = scalar_select %p117, %s118, %s119
      %p123 = pneg %p117
      %p124 = scmp.eq.s32.totalorder %s16, 1
      %p125 = por %p123, %p124
      %p126 = scmp.ne.s32.totalorder %s118, %s121
      %p127 = scmp.eq.s32.totalorder %s16, 0
      %p128 = por %p126, %p127
      %p129 = scmp.ne.s32.totalorder %s118, %s121
      %p130 = scmp.eq.s32.totalorder %s21, 1
      %p131 = por %p129, %p130
      %p132 = scmp.ne.s32.totalorder %s121, %s122
      %p133 = scmp.eq.s32.totalorder %s21, 0
      %p134 = por %p132, %p133
      %p135 = scmp.ne.s32.totalorder %s121, %s122
      %p136 = scmp.eq.s32.totalorder %s22, 1
      %p137 = por %p135, %p136
      %p139 = scmp.ne.s32.totalorder %s122, %s138
      %p140 = scmp.eq.s32.totalorder %s22, 0
      %p141 = por %p139, %p140
      %p142 = scmp.le.s32.totalorder 1, %s16
      %p143 = scmp.lt.s32.totalorder %s16, 3
      %p144 = pnand %p142, %p143
      %p145 = pneg %p144
      // Predicated region
      $region9: #{tpu_custom_call.1} parent=5 // pred_check
        _
      $region10: #{tpu_custom_call.1} parent=5 // pred_check_branch
        %147 = sbr.rel (%p144) target = $region12
      $region11: #{tpu_custom_call.1} parent=5 // pred_region
        %s148 = ssub.s32 %s16, 1
        // Predicated region
        $region13: #{tpu_custom_call.1} parent=11 // pred_check
          %p149 = pneg %p108
        $region14: #{tpu_custom_call.1} parent=11 // pred_check_branch
          %151 = sbr.rel (%p149) target = $region16
        $region15: #{tpu_custom_call.1} parent=11 // pred_region
          %s152 = smul.u32 2, %s25
          %p153 = scmp.lt.s32.totalorder %s152, 1
          %s154 = scalar_select %p153, %s152, 1
          %s155 = scalar_lea.vmem %s2, %s154
          %s156 = smul.u32 2, %s25
        $region16: #{tpu_custom_call.1} parent=11 // pred_fallthru
          _
      $region12: #{tpu_custom_call.1} parent=5 // pred_fallthru
        _
      %p157 = scmp.lt.s32.totalorder %s16, 2
      // Predicated region
      $region17: #{tpu_custom_call.1} parent=5 // pred_check
        %p158 = pneg %p157
      $region18: #{tpu_custom_call.1} parent=5 // pred_check_branch
        %160 = sbr.rel (%p158) target = $region20
      $region19: #{tpu_custom_call.1} parent=5 // pred_region
        // Predicated region
        $region21: #{tpu_custom_call.1} parent=19 // pred_check
          %p161 = pneg %p48
        $region22: #{tpu_custom_call.1} parent=19 // pred_check_branch
          %163 = sbr.rel (%p161) target = $region24
        $region23: #{tpu_custom_call.1} parent=19 // pred_region
          %s164 = sand.u32 %s38, 1
          %s165 = scalar_lea.sflag [#allocation4], %s164
          %s166 = sand.u32 %s38, 1
          %s167 = smul.addr %s166, 8
          %s168 = scalar_lea.vmem [#allocation3], %s167
          %s169 = smul.u32 4, %s24
          %s171 = ssub.s32 128, 128
          %172 = vsyncadd %s165, %s171
          %s173 = smul.addr %s169, 32
          %s174 = scalar_lea.hbm %s0, %s173
          %s176 = sshll.u32 %s168, 4
          %s177 = int_to_ptr.vmem [resolvable:$true] %s176
          %179 = dma.hbm_to_vmem [thread:$0]  %s174, 128, %s177, %s165
        $region24: #{tpu_custom_call.1} parent=19 // pred_fallthru
          _
        // Predicated region
        $region25: #{tpu_custom_call.1} parent=19 // pred_check
          %p180 = pneg %p76
        $region26: #{tpu_custom_call.1} parent=19 // pred_check_branch
          %182 = sbr.rel (%p180) target = $region28
        $region27: #{tpu_custom_call.1} parent=19 // pred_region
          %s183 = sand.u32 %s66, 1
          %s184 = scalar_lea.sflag [#allocation7], %s183
          %s185 = sand.u32 %s66, 1
          %s186 = smul.addr %s185, 1024
          %s187 = scalar_lea.vmem [#allocation6], %s186
          %s188 = smul.u32 64, %s24
          %s189 = smul.u32 2, %s23
          %s191 = ssub.s32 16384, 16384
          %192 = vsyncadd %s184, %s191
          %s193 = smul.addr %s188, 2
          %s194 = sadd.s32 %s189, %s193
          %s195 = smul.addr %s194, 128
          %s196 = scalar_lea.hbm %s1, %s195
          %s197 = sshll.u32 %s187, 4
          %s198 = int_to_ptr.vmem [resolvable:$true] %s197
          %203 = dma.hbm_to_vmem [thread:$0]  %s196, 16384, %s198, %s184, 256, 256, 16
        $region28: #{tpu_custom_call.1} parent=19 // pred_fallthru
          _
      $region20: #{tpu_custom_call.1} parent=5 // pred_fallthru
        _
      %p204 = scmp.le.s32.totalorder 1, %s16
      %p205 = scmp.lt.s32.totalorder %s16, 3
      %p206 = pnand %p204, %p205
      %p207 = pneg %p206
      // Predicated region
      $region29: #{tpu_custom_call.1} parent=5 // pred_check
        _
      $region30: #{tpu_custom_call.1} parent=5 // pred_check_branch
        %209 = sbr.rel (%p206) target = $region32
      $region31: #{tpu_custom_call.1} parent=5 // pred_region
        %s210 = ssub.s32 %s16, 1
        %s211 = sand.u32 %s41, 1
        %s212 = scalar_lea.sflag [#allocation4], %s211
        %s213 = sand.u32 %s41, 1
        %s214 = smul.addr %s213, 8
        %s215 = scalar_lea.vmem [#allocation3], %s214
        // Predicated region
        $region33: #{tpu_custom_call.1} parent=31 // pred_check
          %p216 = pneg %p54
        $region34: #{tpu_custom_call.1} parent=31 // pred_check_branch
          %218 = sbr.rel (%p216) target = $region36
        $region35: #{tpu_custom_call.1} parent=31 // pred_region
          %219 = dma.done %s212, 128
        $region36: #{tpu_custom_call.1} parent=31 // pred_fallthru
          _
        %s220 = sand.u32 %s69, 1
        %s221 = scalar_lea.sflag [#allocation7], %s220
        %s222 = sand.u32 %s69, 1
        %s223 = smul.addr %s222, 1024
        %s224 = scalar_lea.vmem [#allocation6], %s223
        // Predicated region
        $region37: #{tpu_custom_call.1} parent=31 // pred_check
          %p225 = pneg %p82
        $region38: #{tpu_custom_call.1} parent=31 // pred_check_branch
          %227 = sbr.rel (%p225) target = $region40
        $region39: #{tpu_custom_call.1} parent=31 // pred_region
          %228 = dma.done %s221, 16384
        $region40: #{tpu_custom_call.1} parent=31 // pred_fallthru
          _
        %s229 = sand.u32 %s41, 1
        %s230 = scalar_lea.sflag [#allocation4], %s229
        %s231 = sand.u32 %s41, 1
        %s232 = smul.addr %s231, 8
        %s233 = scalar_lea.vmem [#allocation3], %s232
        %p234 = pneg %p54
        %p235 = pneg %p51
        %s236 = sand.u32 %s69, 1
        %s237 = scalar_lea.sflag [#allocation7], %s236
        %s238 = sand.u32 %s69, 1
        %s239 = smul.addr %s238, 1024
        %s240 = scalar_lea.vmem [#allocation6], %s239
        %p241 = pneg %p82
        %p242 = pneg %p79
        %s243 = smul.u32 2, %s25
        %p244 = scmp.lt.s32.totalorder %s243, 1
        %s245 = scalar_select %p244, %s243, 1
        %s246 = scalar_lea.vmem %s2, %s245
        %p247 = pneg %p108
        %p248 = pneg %p105
        %p249 = pneg %p134
        %p250 = pneg %p131
        %s251 = smul.u32 4, %s26
        %s252 = smul.u32 64, %s26
        %s253 = smul.u32 2, %s25
        %s254 = smul.u32 2, %s25
        %p255 = scmp.lt.s32.totalorder %s254, 1
        %s256 = scalar_select %p255, %s254, 1
        %s257 = scalar_lea.vmem %s2, %s256
        %s258 = smul.u32 2, %s25
        %s259 = smul.u32 2, %s25
        %p260 = scmp.eq.s32.totalorder %s26, 0
        // Predicated region
        $region41: #{tpu_custom_call.1} parent=31 // pred_check
          %p261 = pneg %p260
        $region42: #{tpu_custom_call.1} parent=31 // pred_check_branch
          %263 = sbr.rel (%p261) target = $region44
        $region43: #{tpu_custom_call.1} parent=31 // pred_region
          %264 = vst [vmem:[#allocation2] sm:$0xf] 0.0
        $region44: #{tpu_custom_call.1} parent=31 // pred_fallthru
          _
        %v265 = vld [vmem:[#allocation2] sm:$0xf]
        %v266 = vld [vmem:[%s215] sm:$0xff]
        %v267 = vld [vmem:[%s224] sm:$0xff]
        %v268 = vld [vmem:[%s224 + $0x8] sm:$0xff]
        %v269 = vld [vmem:[%s224 + $0x10] sm:$0xff]
        %v270 = vld [vmem:[%s224 + $0x18] sm:$0xff]
        %v271 = vld [vmem:[%s224 + $0x20] sm:$0xff]
        %v272 = vld [vmem:[%s224 + $0x28] sm:$0xff]
        %v273 = vld [vmem:[%s224 + $0x30] sm:$0xff]
        %v274 = vld [vmem:[%s224 + $0x38] sm:$0xff]
        %v275 = vld [vmem:[%s224 + $0x40] sm:$0xff]
        %v276 = vld [vmem:[%s224 + $0x48] sm:$0xff]
        %v277 = vld [vmem:[%s224 + $0x50] sm:$0xff]
        %v278 = vld [vmem:[%s224 + $0x58] sm:$0xff]
        %v279 = vld [vmem:[%s224 + $0x60] sm:$0xff]
        %v280 = vld [vmem:[%s224 + $0x68] sm:$0xff]
        %v281 = vld [vmem:[%s224 + $0x70] sm:$0xff]
        %v282 = vld [vmem:[%s224 + $0x78] sm:$0xff]
        %v283 = vld [vmem:[%s224 + $0x80] sm:$0xff]
        %v284 = vld [vmem:[%s224 + $0x88] sm:$0xff]
        %v285 = vld [vmem:[%s224 + $0x90] sm:$0xff]
        %v286 = vld [vmem:[%s224 + $0x98] sm:$0xff]
        %v287 = vld [vmem:[%s224 + $0xa0] sm:$0xff]
        %v288 = vld [vmem:[%s224 + $0xa8] sm:$0xff]
        %v289 = vld [vmem:[%s224 + $0xb0] sm:$0xff]
        %v290 = vld [vmem:[%s224 + $0xb8] sm:$0xff]
        %v291 = vld [vmem:[%s224 + $0xc0] sm:$0xff]
        %v292 = vld [vmem:[%s224 + $0xc8] sm:$0xff]
        %v293 = vld [vmem:[%s224 + $0xd0] sm:$0xff]
        %v294 = vld [vmem:[%s224 + $0xd8] sm:$0xff]
        %v295 = vld [vmem:[%s224 + $0xe0] sm:$0xff]
        %v296 = vld [vmem:[%s224 + $0xe8] sm:$0xff]
        %v297 = vld [vmem:[%s224 + $0xf0] sm:$0xff]
        %v298 = vld [vmem:[%s224 + $0xf8] sm:$0xff]
        %v299 = vld [vmem:[%s224 + $0x100] sm:$0xff]
        %v300 = vld [vmem:[%s224 + $0x108] sm:$0xff]
        %v301 = vld [vmem:[%s224 + $0x110] sm:$0xff]
        %v302 = vld [vmem:[%s224 + $0x118] sm:$0xff]
        %v303 = vld [vmem:[%s224 + $0x120] sm:$0xff]
        %v304 = vld [vmem:[%s224 + $0x128] sm:$0xff]
        %v305 = vld [vmem:[%s224 + $0x130] sm:$0xff]
        %v306 = vld [vmem:[%s224 + $0x138] sm:$0xff]
        %v307 = vld [vmem:[%s224 + $0x140] sm:$0xff]
        %v308 = vld [vmem:[%s224 + $0x148] sm:$0xff]
        %v309 = vld [vmem:[%s224 + $0x150] sm:$0xff]
        %v310 = vld [vmem:[%s224 + $0x158] sm:$0xff]
        %v311 = vld [vmem:[%s224 + $0x160] sm:$0xff]
        %v312 = vld [vmem:[%s224 + $0x168] sm:$0xff]
        %v313 = vld [vmem:[%s224 + $0x170] sm:$0xff]
        %v314 = vld [vmem:[%s224 + $0x178] sm:$0xff]
        %v315 = vld [vmem:[%s224 + $0x180] sm:$0xff]
        %v316 = vld [vmem:[%s224 + $0x188] sm:$0xff]
        %v317 = vld [vmem:[%s224 + $0x190] sm:$0xff]
        %v318 = vld [vmem:[%s224 + $0x198] sm:$0xff]
        %v319 = vld [vmem:[%s224 + $0x1a0] sm:$0xff]
        %v320 = vld [vmem:[%s224 + $0x1a8] sm:$0xff]
        %v321 = vld [vmem:[%s224 + $0x1b0] sm:$0xff]
        %v322 = vld [vmem:[%s224 + $0x1b8] sm:$0xff]
        %v323 = vld [vmem:[%s224 + $0x1c0] sm:$0xff]
        %v324 = vld [vmem:[%s224 + $0x1c8] sm:$0xff]
        %v325 = vld [vmem:[%s224 + $0x1d0] sm:$0xff]
        %v326 = vld [vmem:[%s224 + $0x1d8] sm:$0xff]
        %v327 = vld [vmem:[%s224 + $0x1e0] sm:$0xff]
        %v328 = vld [vmem:[%s224 + $0x1e8] sm:$0xff]
        %v329 = vld [vmem:[%s224 + $0x1f0] sm:$0xff]
        %v330 = vld [vmem:[%s224 + $0x1f8] sm:$0xff]
        %v331 = vld [vmem:[%s224 + $0x200] sm:$0xff]
        %v332 = vld [vmem:[%s224 + $0x208] sm:$0xff]
        %v333 = vld [vmem:[%s224 + $0x210] sm:$0xff]
        %v334 = vld [vmem:[%s224 + $0x218] sm:$0xff]
        %v335 = vld [vmem:[%s224 + $0x220] sm:$0xff]
        %v336 = vld [vmem:[%s224 + $0x228] sm:$0xff]
        %v337 = vld [vmem:[%s224 + $0x230] sm:$0xff]
        %v338 = vld [vmem:[%s224 + $0x238] sm:$0xff]
        %v339 = vld [vmem:[%s224 + $0x240] sm:$0xff]
        %v340 = vld [vmem:[%s224 + $0x248] sm:$0xff]
        %v341 = vld [vmem:[%s224 + $0x250] sm:$0xff]
        %v342 = vld [vmem:[%s224 + $0x258] sm:$0xff]
        %v343 = vld [vmem:[%s224 + $0x260] sm:$0xff]
        %v344 = vld [vmem:[%s224 + $0x268] sm:$0xff]
        %v345 = vld [vmem:[%s224 + $0x270] sm:$0xff]
        %v346 = vld [vmem:[%s224 + $0x278] sm:$0xff]
        %v347 = vld [vmem:[%s224 + $0x280] sm:$0xff]
        %v348 = vld [vmem:[%s224 + $0x288] sm:$0xff]
        %v349 = vld [vmem:[%s224 + $0x290] sm:$0xff]
        %v350 = vld [vmem:[%s224 + $0x298] sm:$0xff]
        %v351 = vld [vmem:[%s224 + $0x2a0] sm:$0xff]
        %v352 = vld [vmem:[%s224 + $0x2a8] sm:$0xff]
        %v353 = vld [vmem:[%s224 + $0x2b0] sm:$0xff]
        %v354 = vld [vmem:[%s224 + $0x2b8] sm:$0xff]
        %v355 = vld [vmem:[%s224 + $0x2c0] sm:$0xff]
        %v356 = vld [vmem:[%s224 + $0x2c8] sm:$0xff]
        %v357 = vld [vmem:[%s224 + $0x2d0] sm:$0xff]
        %v358 = vld [vmem:[%s224 + $0x2d8] sm:$0xff]
        %v359 = vld [vmem:[%s224 + $0x2e0] sm:$0xff]
        %v360 = vld [vmem:[%s224 + $0x2e8] sm:$0xff]
        %v361 = vld [vmem:[%s224 + $0x2f0] sm:$0xff]
        %v362 = vld [vmem:[%s224 + $0x2f8] sm:$0xff]
        %v363 = vld [vmem:[%s224 + $0x300] sm:$0xff]
        %v364 = vld [vmem:[%s224 + $0x308] sm:$0xff]
        %v365 = vld [vmem:[%s224 + $0x310] sm:$0xff]
        %v366 = vld [vmem:[%s224 + $0x318] sm:$0xff]
        %v367 = vld [vmem:[%s224 + $0x320] sm:$0xff]
        %v368 = vld [vmem:[%s224 + $0x328] sm:$0xff]
        %v369 = vld [vmem:[%s224 + $0x330] sm:$0xff]
        %v370 = vld [vmem:[%s224 + $0x338] sm:$0xff]
        %v371 = vld [vmem:[%s224 + $0x340] sm:$0xff]
        %v372 = vld [vmem:[%s224 + $0x348] sm:$0xff]
        %v373 = vld [vmem:[%s224 + $0x350] sm:$0xff]
        %v374 = vld [vmem:[%s224 + $0x358] sm:$0xff]
        %v375 = vld [vmem:[%s224 + $0x360] sm:$0xff]
        %v376 = vld [vmem:[%s224 + $0x368] sm:$0xff]
        %v377 = vld [vmem:[%s224 + $0x370] sm:$0xff]
        %v378 = vld [vmem:[%s224 + $0x378] sm:$0xff]
        %v379 = vld [vmem:[%s224 + $0x380] sm:$0xff]
        %v380 = vld [vmem:[%s224 + $0x388] sm:$0xff]
        %v381 = vld [vmem:[%s224 + $0x390] sm:$0xff]
        %v382 = vld [vmem:[%s224 + $0x398] sm:$0xff]
        %v383 = vld [vmem:[%s224 + $0x3a0] sm:$0xff]
        %v384 = vld [vmem:[%s224 + $0x3a8] sm:$0xff]
        %v385 = vld [vmem:[%s224 + $0x3b0] sm:$0xff]
        %v386 = vld [vmem:[%s224 + $0x3b8] sm:$0xff]
        %v387 = vld [vmem:[%s224 + $0x3c0] sm:$0xff]
        %v388 = vld [vmem:[%s224 + $0x3c8] sm:$0xff]
        %v389 = vld [vmem:[%s224 + $0x3d0] sm:$0xff]
        %v390 = vld [vmem:[%s224 + $0x3d8] sm:$0xff]
        %v391 = vld [vmem:[%s224 + $0x3e0] sm:$0xff]
        %v392 = vld [vmem:[%s224 + $0x3e8] sm:$0xff]
        %v393 = vld [vmem:[%s224 + $0x3f0] sm:$0xff]
        %v394 = vld [vmem:[%s224 + $0x3f8] sm:$0xff]
        %v396 = vcombine.high %v266, %v266
        %v398 = vunpack.c.l.s4 1983009808
        %v399 = vunpack.c.0.s8 %v398
        %v400 = vlaneseq
        %v401 = vshrl.u32 %v400, 7
        %v402 = vsub.s32 %v399, %v401
        %v403 = vrot.slane %v266, %v402
        %v405 = vunpack.c.l.s4 1983009808
        %v406 = vunpack.c.0.s8 %v405
        %v407 = vlaneseq
        %v408 = vshrl.u32 %v407, 7
        %v409 = vsub.s32 %v406, %v408
        %v410 = vrot.slane %v396, %v409
        %v411 = vcombine.high %v403, %v403
        %v412 = vcombine.high %v410, %v410
        %417 = vmatprep.subr.mxu0 %v268
        %418 = vmatpush1.msra.mxu0 %v267
        %419 = vmatprep.subr.mxu0 %v270
        %420 = vmatpush1.msra.mxu0 %v269
        %421 = vmatprep.subr.mxu0 %v272
        %422 = vmatpush1.msra.mxu0 %v271
        %423 = vmatprep.subr.mxu0 %v274
        %424 = vmatpush1.msra.mxu0 %v273
        %425 = vmatprep.subr.mxu0 %v276
        %426 = vmatpush1.msra.mxu0 %v275
        %427 = vmatprep.subr.mxu0 %v278
        %428 = vmatpush1.msra.mxu0 %v277
        %429 = vmatprep.subr.mxu0 %v280
        %430 = vmatpush1.msra.mxu0 %v279
        %431 = vmatprep.subr.mxu0 %v282
        %432 = vmatpush1.msra.mxu0 %v281
        %433 = vmatprep.subr.mxu0 %v284
        %434 = vmatpush1.msra.mxu0 %v283
        %435 = vmatprep.subr.mxu0 %v286
        %436 = vmatpush1.msra.mxu0 %v285
        %437 = vmatprep.subr.mxu0 %v288
        %438 = vmatpush1.msra.mxu0 %v287
        %439 = vmatprep.subr.mxu0 %v290
        %440 = vmatpush1.msra.mxu0 %v289
        %441 = vmatprep.subr.mxu0 %v292
        %442 = vmatpush1.msra.mxu0 %v291
        %443 = vmatprep.subr.mxu0 %v294
        %444 = vmatpush1.msra.mxu0 %v293
        %445 = vmatprep.subr.mxu0 %v296
        %446 = vmatpush1.msra.mxu0 %v295
        %447 = vmatprep.subr.mxu0 %v298
        %448 = vmatpush1.msra.mxu0 %v297
        %449 = vmatprep.subr.mxu0 %v300
        %450 = vmatpush1.msra.mxu0 %v299
        %451 = vmatprep.subr.mxu0 %v302
        %452 = vmatpush1.msra.mxu0 %v301
        %453 = vmatprep.subr.mxu0 %v304
        %454 = vmatpush1.msra.mxu0 %v303
        %455 = vmatprep.subr.mxu0 %v306
        %456 = vmatpush1.msra.mxu0 %v305
        %457 = vmatprep.subr.mxu0 %v308
        %458 = vmatpush1.msra.mxu0 %v307
        %459 = vmatprep.subr.mxu0 %v310
        %460 = vmatpush1.msra.mxu0 %v309
        %461 = vmatprep.subr.mxu0 %v312
        %462 = vmatpush1.msra.mxu0 %v311
        %463 = vmatprep.subr.mxu0 %v314
        %464 = vmatpush1.msra.mxu0 %v313
        %465 = vmatprep.subr.mxu0 %v316
        %466 = vmatpush1.msra.mxu0 %v315
        %467 = vmatprep.subr.mxu0 %v318
        %468 = vmatpush1.msra.mxu0 %v317
        %469 = vmatprep.subr.mxu0 %v320
        %470 = vmatpush1.msra.mxu0 %v319
        %471 = vmatprep.subr.mxu0 %v322
        %472 = vmatpush1.msra.mxu0 %v321
        %473 = vmatprep.subr.mxu0 %v324
        %474 = vmatpush1.msra.mxu0 %v323
        %475 = vmatprep.subr.mxu0 %v326
        %476 = vmatpush1.msra.mxu0 %v325
        %477 = vmatprep.subr.mxu0 %v328
        %478 = vmatpush1.msra.mxu0 %v327
        %479 = vmatprep.subr.mxu0 %v330
        %480 = vmatpush1.msra.mxu0 %v329
        %481 = vmatprep.mubr.f32.mxu0 %v411
        %482 = vmatmul.mubr.f32.gmra.mrb[0].mxu0 %v403
        %v483 = vpop.f32.mrb[0].mxu0
        %v484 = vadd.f32 0.0, %v483
        %v485 = vpop.f32.mrb[0].mxu0
        %v486 = vadd.f32 0.0, %v485
        %487 = vdwg.mxu0
        %488 = vmatprep.subr.mxu0 %v332
        %489 = vmatpush1.msra.mxu0 %v331
        %490 = vmatprep.subr.mxu0 %v334
        %491 = vmatpush1.msra.mxu0 %v333
        %492 = vmatprep.subr.mxu0 %v336
        %493 = vmatpush1.msra.mxu0 %v335
        %494 = vmatprep.subr.mxu0 %v338
        %495 = vmatpush1.msra.mxu0 %v337
        %496 = vmatprep.subr.mxu0 %v340
        %497 = vmatpush1.msra.mxu0 %v339
        %498 = vmatprep.subr.mxu0 %v342
        %499 = vmatpush1.msra.mxu0 %v341
        %500 = vmatprep.subr.mxu0 %v344
        %501 = vmatpush1.msra.mxu0 %v343
        %502 = vmatprep.subr.mxu0 %v346
        %503 = vmatpush1.msra.mxu0 %v345
        %504 = vmatprep.subr.mxu0 %v348
        %505 = vmatpush1.msra.mxu0 %v347
        %506 = vmatprep.subr.mxu0 %v350
        %507 = vmatpush1.msra.mxu0 %v349
        %508 = vmatprep.subr.mxu0 %v352
        %509 = vmatpush1.msra.mxu0 %v351
        %510 = vmatprep.subr.mxu0 %v354
        %511 = vmatpush1.msra.mxu0 %v353
        %512 = vmatprep.subr.mxu0 %v356
        %513 = vmatpush1.msra.mxu0 %v355
        %514 = vmatprep.subr.mxu0 %v358
        %515 = vmatpush1.msra.mxu0 %v357
        %516 = vmatprep.subr.mxu0 %v360
        %517 = vmatpush1.msra.mxu0 %v359
        %518 = vmatprep.subr.mxu0 %v362
        %519 = vmatpush1.msra.mxu0 %v361
        %520 = vmatprep.subr.mxu0 %v364
        %521 = vmatpush1.msra.mxu0 %v363
        %522 = vmatprep.subr.mxu0 %v366
        %523 = vmatpush1.msra.mxu0 %v365
        %524 = vmatprep.subr.mxu0 %v368
        %525 = vmatpush1.msra.mxu0 %v367
        %526 = vmatprep.subr.mxu0 %v370
        %527 = vmatpush1.msra.mxu0 %v369
        %528 = vmatprep.subr.mxu0 %v372
        %529 = vmatpush1.msra.mxu0 %v371
        %530 = vmatprep.subr.mxu0 %v374
        %531 = vmatpush1.msra.mxu0 %v373
        %532 = vmatprep.subr.mxu0 %v376
        %533 = vmatpush1.msra.mxu0 %v375
        %534 = vmatprep.subr.mxu0 %v378
        %535 = vmatpush1.msra.mxu0 %v377
        %536 = vmatprep.subr.mxu0 %v380
        %537 = vmatpush1.msra.mxu0 %v379
        %538 = vmatprep.subr.mxu0 %v382
        %539 = vmatpush1.msra.mxu0 %v381
        %540 = vmatprep.subr.mxu0 %v384
        %541 = vmatpush1.msra.mxu0 %v383
        %542 = vmatprep.subr.mxu0 %v386
        %543 = vmatpush1.msra.mxu0 %v385
        %544 = vmatprep.subr.mxu0 %v388
        %545 = vmatpush1.msra.mxu0 %v387
        %546 = vmatprep.subr.mxu0 %v390
        %547 = vmatpush1.msra.mxu0 %v389
        %548 = vmatprep.subr.mxu0 %v392
        %549 = vmatpush1.msra.mxu0 %v391
        %550 = vmatprep.subr.mxu0 %v394
        %551 = vmatpush1.msra.mxu0 %v393
        %552 = vmatprep.mubr.f32.mxu0 %v412
        %553 = vmatmul.mubr.f32.gmra.mrb[0].mxu0 %v410
        %v554 = vpop.f32.mrb[0].mxu0
        %v555 = vadd.f32 %v484, %v554
        %v556 = vpop.f32.mrb[0].mxu0
        %v557 = vadd.f32 %v486, %v556
        %558 = vdwg.mxu0
        %v561 = vcombine.low %v555, %v557
        %v563 = vunpack.c.l.s4 1983009808
        %v564 = vunpack.c.0.s8 %v563
        %v565 = vlaneseq
        %v566 = vshrl.u32 %v565, 7
        %v567 = vsub.s32 %v564, %v566
        %v568 = vrot.slane %v561, %v567
        %v570 = vadd.f32 %v265, %v568
        %571 = vst [vmem:[#allocation2] sm:$0xf] %v570
        %p572 = scmp.eq.s32.totalorder %s26, 1
        // Predicated region
        $region45: #{tpu_custom_call.1} parent=31 // pred_check
          %p573 = pneg %p572
        $region46: #{tpu_custom_call.1} parent=31 // pred_check_branch
          %575 = sbr.rel (%p573) target = $region48
        $region47: #{tpu_custom_call.1} parent=31 // pred_region
          %v576 = vld [vmem:[#allocation2] sm:$0xf]
          %v577 = vld [vmem:[%s257] sm:$0x3]
          %v579 = vlaneseq
          %v580 = vshrl.u32 %v579, 7
          %v581 = vsub.s32 0, %v580
          %v582 = vrot.slane %v577, %v581
          %v583 = vlaneseq
          %v584 = vshrl.u32 %v583, 7
          %v585 = vsub.s32 1, %v584
          %v586 = vrot.slane %v577, %v585
          %v587 = vcombine.low %v582, %v586
          %v589 = vunpack.c.l.s4 1983009808
          %v590 = vunpack.c.0.s8 %v589
          %v591 = vlaneseq
          %v592 = vshrl.u32 %v591, 7
          %v593 = vsub.s32 %v590, %v592
          %v594 = vrot.slane %v587, %v593
          %v596 = vadd.f32 %v576, %v594
          %v597 = vmax.f32 %v596, 0.0
          %598 = vst [vmem:[#allocation8] sm:$0xf] %v597
        $region48: #{tpu_custom_call.1} parent=31 // pred_fallthru
          _
        // Predicated region
        $region49: #{tpu_custom_call.1} parent=31 // pred_check
          %p599 = pneg %p131
        $region50: #{tpu_custom_call.1} parent=31 // pred_check_branch
          %601 = sbr.rel (%p599) target = $region52
        $region51: #{tpu_custom_call.1} parent=31 // pred_region
          %s602 = smul.u32 2, %s25
          %s604 = ssub.s32 64, 64
          %605 = vsyncadd [#allocation5], %s604
          %s606 = smul.addr %s602, 32
          %s607 = scalar_lea.hbm %s3, %s606
          %s609 = sshll.u32 [#allocation8], 4
          %s610 = int_to_ptr.vmem [resolvable:$true] %s609
          %612 = dma.vmem_to_hbm [thread:$0]  %s610, 64, %s607, [#allocation5]
        $region52: #{tpu_custom_call.1} parent=31 // pred_fallthru
          _
        // Predicated region
        $region53: #{tpu_custom_call.1} parent=31 // pred_check
          %p613 = pneg %p131
        $region54: #{tpu_custom_call.1} parent=31 // pred_check_branch
          %615 = sbr.rel (%p613) target = $region56
        $region55: #{tpu_custom_call.1} parent=31 // pred_region
          %616 = dma.done [#allocation5], 64
        $region56: #{tpu_custom_call.1} parent=31 // pred_fallthru
          _
      $region32: #{tpu_custom_call.1} parent=5 // pred_fallthru
        _
      %p617 = scmp.le.s32.totalorder 2, %s16
      // Predicated region
      $region57: #{tpu_custom_call.1} parent=5 // pred_check
        %p618 = pneg %p617
      $region58: #{tpu_custom_call.1} parent=5 // pred_check_branch
        %620 = sbr.rel (%p618) target = $region60
      $region59: #{tpu_custom_call.1} parent=5 // pred_region
        %s621 = ssub.s32 %s16, 2
      $region60: #{tpu_custom_call.1} parent=5 // pred_fallthru
        _
    $region6: #{tpu_custom_call.1} parent=1 // loop_footer
      %s20 = sadd.s32 1, %s16
    $region7: #{tpu_custom_call.1} parent=1 // loop_footer_branch
      %15 = sbr.rel target = $region3
    $region8: #{tpu_custom_call.1} parent=1 // loop_exit
      _
    %622 = vsyncpa [#allocation4], 1
    %s623 = scalar_lea.sflag [#allocation4], 1
    %624 = vsyncpa %s623, 1
    %625 = vsyncpa [#allocation7], 1
    %s626 = scalar_lea.sflag [#allocation7], 1
    %627 = vsyncpa %s626, 1
    %628 = vsyncpa [#allocation5], 1
    %s629 = scalar_lea.sflag [#allocation5], 1
    %630 = vsyncpa %s629, 1

</llo_original>
